<compile_context>
chip_gen: v5e
topology: v5e:2x2
jax: 0.10.0
libtpu: 0.0.40
codegen_flags: <defaults>
</compile_context>

<pallas_src>
import jax
import jax.numpy as jnp
from jax.experimental import pallas as pl
from jax.experimental.pallas import tpu as pltpu


# ---------------- network / packed-parameter layout constants ----------------
_IN = 4            # input features
_H = 64            # hidden width
_OUT = 2           # true output width (Q-values)
_OUT_PAD = 8       # fc3 rows padded to one f32 sublane tile for the MXU
_LANES = 128       # packed-parameter buffer lane width

# Row offsets inside the packed (272, 128) parameter buffer (all 8-aligned,
# everything starts at lane 0; unused entries are zero).
_W1_R = 0          # w1 (64, 4)
_W2_R = 64         # w2 (64, 64)
_W3_R = 128        # w3 (2, 64), rows 130..135 zero
_B1_R = 136        # b1 (64,) in lane 0
_B2_R = 200        # b2 (64,) in lane 0
_B3_R = 264        # b3 (2,)  in lane 0, rows 266..271 zero
_P_ROWS = 272


def dqn_kernel(x_ref, p_ref, o_ref):
    x = x_ref[...]                                      # (4, TILE_B) feature-major

    # ---- fc1 + ReLU: K=4 contraction as 4 FMAs on the VPU -------------------
    # x rows broadcast across sublanes (cheap); the tiny (64,1) weight columns
    # broadcast across lanes once each per tile.
    w1 = p_ref[_W1_R:_W1_R + _H, 0:_IN]                 # (64, 4)
    b1 = p_ref[_B1_R:_B1_R + _H, 0:1]                   # (64, 1)
    h1 = b1 + w1[:, 0:1] * x[0:1, :]
    for k in range(1, _IN):                             # static unroll
        h1 = h1 + w1[:, k:k + 1] * x[k:k + 1, :]
    h1 = jnp.maximum(h1, 0.0)                           # (64, TILE_B)

    # ---- fc2 + ReLU on the MXU: (64,64) @ (64, TILE_B) -----------------------
    w2 = p_ref[_W2_R:_W2_R + _H, 0:_H]                  # (64, 64)
    b2 = p_ref[_B2_R:_B2_R + _H, 0:1]                   # (64, 1)
    h2 = jnp.dot(w2, h1, preferred_element_type=jnp.float32) + b2
    h2 = jnp.maximum(h2, 0.0)                           # (64, TILE_B)

    # ---- fc3 on the MXU: (8,64) @ (64, TILE_B); rows 2..7 of w3/b3 are zero --
    w3 = p_ref[_W3_R:_W3_R + _OUT_PAD, 0:_H]            # (8, 64)
    b3 = p_ref[_B3_R:_B3_R + _OUT_PAD, 0:1]             # (8, 1)
    out = jnp.dot(w3, h2, preferred_element_type=jnp.float32) + b3

    # Lane-dense store: only the 2 real Q-value rows are written back.
    o_ref[...] = out[0:_OUT, :].astype(o_ref.dtype)


def pack_params(params):
    """Pack PyTorch-layout (w1,b1,w2,b2,w3,b3) into one (272, 128) f32 buffer.

    Call ONCE whenever the parameters change; pass the result to dqn_forward.
    """
    w1, b1, w2, b2, w3, b3 = params
    p = jnp.zeros((_P_ROWS, _LANES), jnp.float32)
    p = p.at[_W1_R:_W1_R + _H, 0:_IN].set(w1.astype(jnp.float32))
    p = p.at[_W2_R:_W2_R + _H, 0:_H].set(w2.astype(jnp.float32))
    p = p.at[_W3_R:_W3_R + _OUT, 0:_H].set(w3.astype(jnp.float32))
    p = p.at[_B1_R:_B1_R + _H, 0].set(b1.reshape(-1).astype(jnp.float32))
    p = p.at[_B2_R:_B2_R + _H, 0].set(b2.reshape(-1).astype(jnp.float32))
    p = p.at[_B3_R:_B3_R + _OUT, 0].set(b3.reshape(-1).astype(jnp.float32))
    return p


def dqn_forward(x, packed_params, *, tile_b=2048):
    """Forward pass; x is (B, 4) f32, packed_params from pack_params().

    Returns (B, 2) f32 Q-values.
    """
    B = x.shape[0]
    xt = x.astype(jnp.float32).T                        # (4, B) feature-major

    # Batch (lane) padding to a multiple of 128; tile is a multiple of 128.
    tile_b = max(128, (int(tile_b) // 128) * 128)
    b_pad = ((B + 127) // 128) * 128
    tile_b = min(tile_b, b_pad)
    # Keep >= 2 grid steps when the batch allows it so v7x's second
    # TensorCore is used (no effect on v5e/v6e: 1 TC per chip).
    if b_pad >= 256:
        tile_b = min(tile_b, max(128, (b_pad // 2) // 128 * 128))
    b_pad = ((b_pad + tile_b - 1) // tile_b) * tile_b

    if b_pad != B:
        xt = jnp.pad(xt, ((0, 0), (0, b_pad - B)))

    grid = (b_pad // tile_b,)
    out = pl.pallas_call(
        dqn_kernel,
        out_shape=jax.ShapeDtypeStruct((_OUT, b_pad), jnp.float32),
        grid=grid,
        in_specs=[
            # streamed batch tiles, lane-dense along batch (double-buffered)
            pl.BlockSpec((_IN, tile_b), lambda i: (0, i)),
            # packed parameters: constant index_map -> fetched once, resident
            pl.BlockSpec((_P_ROWS, _LANES), lambda i: (0, 0)),
        ],
        # lane-dense (2, tile_b) output block: 8 B of writeback per sample
        out_specs=pl.BlockSpec((_OUT, tile_b), lambda i: (0, i)),
        compiler_params=pltpu.CompilerParams(
            dimension_semantics=("parallel",)),
    )(xt, packed_params)
    return out[:, :B].T                                 # (B, 2)


def init_params(key):
    """Deterministic init matching PyTorch nn.Linear default scheme
    (uniform(-1/sqrt(fan_in), 1/sqrt(fan_in))); weights in (out, in) layout."""
    def linear(k, fan_in, fan_out):
        kw, kb = jax.random.split(k)
        bound = 1.0 / jnp.sqrt(fan_in)
        w = jax.random.uniform(kw, (fan_out, fan_in), jnp.float32, -bound, bound)
        b = jax.random.uniform(kb, (fan_out,), jnp.float32, -bound, bound)
        return w, b

    k1, k2, k3 = jax.random.split(key, 3)
    w1, b1 = linear(k1, _IN, _H)
    w2, b2 = linear(k2, _H, _H)
    w3, b3 = linear(k3, _H, _OUT)
    return (w1, b1, w2, b2, w3, b3)


def dqn_reference(x, params):
    """Pure-JAX reference matching the PyTorch module (y = x @ W.T + b)."""
    w1, b1, w2, b2, w3, b3 = params
    hp = jax.lax.Precision.HIGHEST
    h1 = jnp.maximum(jnp.dot(x, w1.T, precision=hp) + b1, 0.0)
    h2 = jnp.maximum(jnp.dot(h1, w2.T, precision=hp) + b2, 0.0)
    return jnp.dot(h2, w3.T, precision=hp) + b3


if __name__ == "__main__":
    key = jax.random.PRNGKey(0)
    k_params, k_x1, k_x2 = jax.random.split(key, 3)

    params = init_params(k_params)
    packed = pack_params(params)      # packed once, reused across forward calls

    # Small CartPole-style demo batch (4 state features).
    B = 8
    x = jax.random.normal(k_x1, (B, 4), jnp.float32)
    out = jax.block_until_ready(dqn_forward(x, packed))
    ref = dqn_reference(x, params)
    assert out.shape == (B, _OUT)
    assert jnp.allclose(out, ref, atol=1e-4, rtol=1e-4), "mismatch vs reference (B=8)"

    # Larger ragged batch to exercise the multi-step (multi-TensorCore) grid path.
    B2 = 300
    x2 = jax.random.normal(k_x2, (B2, 4), jnp.float32)
    out2 = jax.block_until_ready(dqn_forward(x2, packed))
    ref2 = dqn_reference(x2, params)
    assert out2.shape == (B2, _OUT)
    assert jnp.allclose(out2, ref2, atol=1e-4, rtol=1e-4), "mismatch vs reference (B=300)"

    print("KERNEL_OK")
</pallas_src>

<mosaic_0001>
module attributes {stable_mosaic.version = 11 : i64} {
  func.func @dqn_kernel(%arg0: i32, %arg1: memref<4x128xf32, #tpu.memory_space<vmem>>, %arg2: memref<272x128xf32, #tpu.memory_space<vmem>>, %arg3: memref<2x128xf32, #tpu.memory_space<vmem>>) attributes {dimension_semantics = [#tpu.dimension_semantics<parallel>], iteration_bounds = array<i64: 1>, scalar_prefetch = 0 : i64, scratch_operands = 0 : i64, tpu.core_type = #tpu.core_type<tc>, window_params = [{transform_indices = @transform_0, window_bounds = array<i64: 4, 128>}, {pipeline_mode = #tpu.pipeline_mode<synchronous>, transform_indices = @transform_1, window_bounds = array<i64: 272, 128>}, {transform_indices = @transform_2, window_bounds = array<i64: 2, 128>}]} {
    %c0 = arith.constant 0 : index
    %c0_0 = arith.constant 0 : index
    %0 = vector.load %arg1[%c0, %c0_0] : memref<4x128xf32, #tpu.memory_space<vmem>>, vector<4x128xf32>
    %c0_1 = arith.constant 0 : index
    %c0_2 = arith.constant 0 : index
    %1 = vector.load %arg2[%c0_1, %c0_2] : memref<272x128xf32, #tpu.memory_space<vmem>>, vector<64x4xf32>
    %c136 = arith.constant 136 : index
    %c0_3 = arith.constant 0 : index
    %2 = vector.load %arg2[%c136, %c0_3] : memref<272x128xf32, #tpu.memory_space<vmem>>, vector<64x1xf32>
    %3 = vector.extract_strided_slice %1 {offsets = [0, 0], sizes = [64, 1], strides = [1, 1]} : vector<64x4xf32> to vector<64x1xf32>
    %4 = vector.extract_strided_slice %0 {offsets = [0, 0], sizes = [1, 128], strides = [1, 1]} : vector<4x128xf32> to vector<1x128xf32>
    %5 = vector.broadcast %3 : vector<64x1xf32> to vector<64x128xf32>
    %6 = vector.broadcast %4 : vector<1x128xf32> to vector<64x128xf32>
    %7 = arith.mulf %5, %6 : vector<64x128xf32>
    %8 = vector.broadcast %2 : vector<64x1xf32> to vector<64x128xf32>
    %9 = arith.addf %8, %7 : vector<64x128xf32>
    %10 = vector.extract_strided_slice %1 {offsets = [0, 1], sizes = [64, 1], strides = [1, 1]} : vector<64x4xf32> to vector<64x1xf32>
    %11 = vector.extract_strided_slice %0 {offsets = [1, 0], sizes = [1, 128], strides = [1, 1]} : vector<4x128xf32> to vector<1x128xf32>
    %12 = vector.broadcast %10 : vector<64x1xf32> to vector<64x128xf32>
    %13 = vector.broadcast %11 : vector<1x128xf32> to vector<64x128xf32>
    %14 = arith.mulf %12, %13 : vector<64x128xf32>
    %15 = arith.addf %9, %14 : vector<64x128xf32>
    %16 = vector.extract_strided_slice %1 {offsets = [0, 2], sizes = [64, 1], strides = [1, 1]} : vector<64x4xf32> to vector<64x1xf32>
    %17 = vector.extract_strided_slice %0 {offsets = [2, 0], sizes = [1, 128], strides = [1, 1]} : vector<4x128xf32> to vector<1x128xf32>
    %18 = vector.broadcast %16 : vector<64x1xf32> to vector<64x128xf32>
    %19 = vector.broadcast %17 : vector<1x128xf32> to vector<64x128xf32>
    %20 = arith.mulf %18, %19 : vector<64x128xf32>
    %21 = arith.addf %15, %20 : vector<64x128xf32>
    %22 = vector.extract_strided_slice %1 {offsets = [0, 3], sizes = [64, 1], strides = [1, 1]} : vector<64x4xf32> to vector<64x1xf32>
    %23 = vector.extract_strided_slice %0 {offsets = [3, 0], sizes = [1, 128], strides = [1, 1]} : vector<4x128xf32> to vector<1x128xf32>
    %24 = vector.broadcast %22 : vector<64x1xf32> to vector<64x128xf32>
    %25 = vector.broadcast %23 : vector<1x128xf32> to vector<64x128xf32>
    %26 = arith.mulf %24, %25 : vector<64x128xf32>
    %27 = arith.addf %21, %26 : vector<64x128xf32>
    %cst = arith.constant 0.000000e+00 : f32
    %28 = vector.broadcast %cst : f32 to vector<64x128xf32>
    %29 = arith.maximumf %27, %28 : vector<64x128xf32>
    %c64 = arith.constant 64 : index
    %c0_4 = arith.constant 0 : index
    %30 = vector.load %arg2[%c64, %c0_4] : memref<272x128xf32, #tpu.memory_space<vmem>>, vector<64x64xf32>
    %c200 = arith.constant 200 : index
    %c0_5 = arith.constant 0 : index
    %31 = vector.load %arg2[%c200, %c0_5] : memref<272x128xf32, #tpu.memory_space<vmem>>, vector<64x1xf32>
    %cst_6 = arith.constant dense<0.000000e+00> : vector<64x128xf32>
    %32 = tpu.matmul %30, %29, %cst_6 {dimension_numbers = #tpu.dot_dimension_numbers<[1], [0], [0], [1], [0, 0, 1, 1], [], []>} : vector<64x64xf32>, vector<64x128xf32>, vector<64x128xf32> -> vector<64x128xf32>
    %33 = vector.broadcast %31 : vector<64x1xf32> to vector<64x128xf32>
    %34 = arith.addf %32, %33 : vector<64x128xf32>
    %cst_7 = arith.constant 0.000000e+00 : f32
    %35 = vector.broadcast %cst_7 : f32 to vector<64x128xf32>
    %36 = arith.maximumf %34, %35 : vector<64x128xf32>
    %c128 = arith.constant 128 : index
    %c0_8 = arith.constant 0 : index
    %37 = vector.load %arg2[%c128, %c0_8] : memref<272x128xf32, #tpu.memory_space<vmem>>, vector<8x64xf32>
    %c264 = arith.constant 264 : index
    %c0_9 = arith.constant 0 : index
    %38 = vector.load %arg2[%c264, %c0_9] : memref<272x128xf32, #tpu.memory_space<vmem>>, vector<8x1xf32>
    %cst_10 = arith.constant dense<0.000000e+00> : vector<8x128xf32>
    %39 = tpu.matmul %37, %36, %cst_10 {dimension_numbers = #tpu.dot_dimension_numbers<[1], [0], [0], [1], [0, 0, 1, 1], [], []>} : vector<8x64xf32>, vector<64x128xf32>, vector<8x128xf32> -> vector<8x128xf32>
    %40 = vector.broadcast %38 : vector<8x1xf32> to vector<8x128xf32>
    %41 = arith.addf %39, %40 : vector<8x128xf32>
    %42 = vector.extract_strided_slice %41 {offsets = [0, 0], sizes = [2, 128], strides = [1, 1]} : vector<8x128xf32> to vector<2x128xf32>
    %c0_11 = arith.constant 0 : index
    %c0_12 = arith.constant 0 : index
    %43 = vector.load %arg3[%c0_11, %c0_12] : memref<2x128xf32, #tpu.memory_space<vmem>>, vector<2x128xf32>
    tpu.vector_store %arg3[%c0_11, %c0_12], %42 {strides = array<i32>} : memref<2x128xf32, #tpu.memory_space<vmem>>, vector<2x128xf32>,
    return
  }
  func.func @transform_0(%arg0: i32) -> (i32, i32) {
    %c0_i32 = arith.constant 0 : i32
    %c0_i32_0 = arith.constant 0 : i32
    return %c0_i32, %arg0 : i32, i32
  }
  func.func @transform_1(%arg0: i32) -> (i32, i32) {
    %c0_i32 = arith.constant 0 : i32
    %c0_i32_0 = arith.constant 0 : i32
    %c0_i32_1 = arith.constant 0 : i32
    return %c0_i32, %c0_i32_0 : i32, i32
  }
  func.func @transform_2(%arg0: i32) -> (i32, i32) {
    %c0_i32 = arith.constant 0 : i32
    %c0_i32_0 = arith.constant 0 : i32
    return %c0_i32, %arg0 : i32, i32
  }
}

</mosaic_0001>

<llo_original>
// kernel: tpu_custom_call.1
$region0: #{tpu_custom_call.1}
  #allocation0 [shape = 'u32[]', space=smem, size = 0x4, offset = 0x4, fixed_abs, tag = 'smem constant byte address 0x4 - core index']
  #allocation1 [shape = 'u32[72,128]{1,0:T(1,128)}', space=vmem, size = 0x9000, scoped, tag = 'internal scratch']
  %s0 = inlined_call_operand.hbm [shape: f32[4,128], index: 0, kind: input, shape index: {}]
  %s1 = inlined_call_operand.hbm [shape: f32[272,128], index: 1, kind: input, shape index: {}]
  %s2 = inlined_call_operand.hbm [shape: f32[2,128], index: 2, kind: output, shape index: {}]
  %s3 = sld [smem:[#allocation0]]
  $region26: #{tpu_custom_call.1} parent=0
    _
  %s5 = ssub.s32 1, %s3
  %s6 = scalar_select 0, %s5, %s3
  $region1: #{tpu_custom_call.1} parent=0
    #allocation2 [shape = 'u8[2048]{0}', space=vmem, size = 0x800, scoped, tag = 'input window, operand 0, single buffered']
    #allocation3 [shape = 's32[1]{0}', space=sflag, size = 0x4, scoped, tag = 'scoped memory for tpu_custom_call.1']
    #allocation4 [shape = 's32[1]{0}', space=sflag, size = 0x4, scoped, tag = 'scoped memory for tpu_custom_call.1']
    #allocation5 [shape = 'u8[139264]{0}', space=vmem, size = 0x22000, scoped, tag = 'input window, operand 1, single buffered']
    #allocation6 [shape = 's32[1]{0}', space=sflag, size = 0x4, scoped, tag = 'scoped memory for tpu_custom_call.1']
    #allocation7 [shape = 'u8[1024]{0}', space=vmem, size = 0x400, scoped, tag = 'output window, operand 0, single buffered']
    %7 = vsyncpa [#allocation3], 0
    %8 = vsyncpa [#allocation6], 0
    %9 = vsyncpa [#allocation4], 0
    // Predicated region
    $region2: #{tpu_custom_call.1} parent=1 // pred_check
      _
    $region3: #{tpu_custom_call.1} parent=1 // pred_check_branch
      %11 = sbr.rel (0) target = $region5
    $region4: #{tpu_custom_call.1} parent=1 // pred_region
      %13 = vsyncadd [#allocation3], 0
      %s15 = sshll.u32 %s0, 4
      %s16 = int_to_ptr.hbm [resolvable:$true] %s15
      %s17 = sshll.u32 [#allocation2], 4
      %s18 = int_to_ptr.vmem [resolvable:$true] %s17
      %20 = dma.hbm_to_vmem [thread:$0]  %s16, 64, %s18, [#allocation3]
    $region5: #{tpu_custom_call.1} parent=1 // pred_fallthru
      _
    // Predicated region
    $region6: #{tpu_custom_call.1} parent=1 // pred_check
      _
    $region7: #{tpu_custom_call.1} parent=1 // pred_check_branch
      %22 = sbr.rel (0) target = $region9
    $region8: #{tpu_custom_call.1} parent=1 // pred_region
      %24 = vsyncadd [#allocation6], 0
      %s25 = sshll.u32 %s1, 4
      %s26 = int_to_ptr.hbm [resolvable:$true] %s25
      %s27 = sshll.u32 [#allocation5], 4
      %s28 = int_to_ptr.vmem [resolvable:$true] %s27
      %33 = dma.hbm_to_vmem [thread:$0]  %s26, 4352, %s28, [#allocation6], 128, 128, 8
    $region9: #{tpu_custom_call.1} parent=1 // pred_fallthru
      _
    // Predicated region
    $region10: #{tpu_custom_call.1} parent=1 // pred_check
      _
    $region11: #{tpu_custom_call.1} parent=1 // pred_check_branch
      %35 = sbr.rel (0) target = $region13
    $region12: #{tpu_custom_call.1} parent=1 // pred_region
      %37 = dma.done [#allocation3], 64
    $region13: #{tpu_custom_call.1} parent=1 // pred_fallthru
      _
    // Predicated region
    $region14: #{tpu_custom_call.1} parent=1 // pred_check
      _
    $region15: #{tpu_custom_call.1} parent=1 // pred_check_branch
      %39 = sbr.rel (0) target = $region17
    $region16: #{tpu_custom_call.1} parent=1 // pred_region
      %41 = dma.done [#allocation6], 4352
    $region17: #{tpu_custom_call.1} parent=1 // pred_fallthru
      _
    %v42 = vld [vmem:[#allocation2] sm:$0xf]
    %v43 = vld [vmem:[#allocation5] sm:$0xff]
    %v44 = vld [vmem:[#allocation5 + $0x8] sm:$0xff]
    %v45 = vld [vmem:[#allocation5 + $0x10] sm:$0xff]
    %v46 = vld [vmem:[#allocation5 + $0x18] sm:$0xff]
    %v47 = vld [vmem:[#allocation5 + $0x20] sm:$0xff]
    %v48 = vld [vmem:[#allocation5 + $0x28] sm:$0xff]
    %v49 = vld [vmem:[#allocation5 + $0x30] sm:$0xff]
    %v50 = vld [vmem:[#allocation5 + $0x38] sm:$0xff]
    %v51 = vld [vmem:[#allocation5 + $0x88] sm:$0xff]
    %v52 = vld [vmem:[#allocation5 + $0x90] sm:$0xff]
    %v53 = vld [vmem:[#allocation5 + $0x98] sm:$0xff]
    %v54 = vld [vmem:[#allocation5 + $0xa0] sm:$0xff]
    %v55 = vld [vmem:[#allocation5 + $0xa8] sm:$0xff]
    %v56 = vld [vmem:[#allocation5 + $0xb0] sm:$0xff]
    %v57 = vld [vmem:[#allocation5 + $0xb8] sm:$0xff]
    %v58 = vld [vmem:[#allocation5 + $0xc0] sm:$0xff]
    %60 = vset.pattern.permute.xlu0 0
    %61 = vperm.xlu0 %60, %v43
    %v62 = vpop.permute.xlu0 %61
    %65 = vset.pattern.permute.xlu0 0
    %66 = vperm.xlu0 %65, %v44
    %v67 = vpop.permute.xlu0 %66
    %70 = vset.pattern.permute.xlu0 0
    %71 = vperm.xlu0 %70, %v45
    %v72 = vpop.permute.xlu0 %71
    %75 = vset.pattern.permute.xlu0 0
    %76 = vperm.xlu0 %75, %v46
    %v77 = vpop.permute.xlu0 %76
    %80 = vset.pattern.permute.xlu0 0
    %81 = vperm.xlu0 %80, %v47
    %v82 = vpop.permute.xlu0 %81
    %85 = vset.pattern.permute.xlu0 0
    %86 = vperm.xlu0 %85, %v48
    %v87 = vpop.permute.xlu0 %86
    %90 = vset.pattern.permute.xlu0 0
    %91 = vperm.xlu0 %90, %v49
    %v92 = vpop.permute.xlu0 %91
    %95 = vset.pattern.permute.xlu0 0
    %96 = vperm.xlu0 %95, %v50
    %v97 = vpop.permute.xlu0 %96
    %v99 = vperm.slane %v42, 0
    %v100 = vmul.f32 %v62, %v99
    %v101 = vmul.f32 %v67, %v99
    %v102 = vmul.f32 %v72, %v99
    %v103 = vmul.f32 %v77, %v99
    %v104 = vmul.f32 %v82, %v99
    %v105 = vmul.f32 %v87, %v99
    %v106 = vmul.f32 %v92, %v99
    %v107 = vmul.f32 %v97, %v99
    %109 = vset.pattern.permute.xlu0 0
    %110 = vperm.xlu0 %109, %v51
    %v111 = vpop.permute.xlu0 %110
    %114 = vset.pattern.permute.xlu0 0
    %115 = vperm.xlu0 %114, %v52
    %v116 = vpop.permute.xlu0 %115
    %119 = vset.pattern.permute.xlu0 0
    %120 = vperm.xlu0 %119, %v53
    %v121 = vpop.permute.xlu0 %120
    %124 = vset.pattern.permute.xlu0 0
    %125 = vperm.xlu0 %124, %v54
    %v126 = vpop.permute.xlu0 %125
    %129 = vset.pattern.permute.xlu0 0
    %130 = vperm.xlu0 %129, %v55
    %v131 = vpop.permute.xlu0 %130
    %134 = vset.pattern.permute.xlu0 0
    %135 = vperm.xlu0 %134, %v56
    %v136 = vpop.permute.xlu0 %135
    %139 = vset.pattern.permute.xlu0 0
    %140 = vperm.xlu0 %139, %v57
    %v141 = vpop.permute.xlu0 %140
    %144 = vset.pattern.permute.xlu0 0
    %145 = vperm.xlu0 %144, %v58
    %v146 = vpop.permute.xlu0 %145
    %v148 = vadd.f32 %v111, %v100
    %v149 = vadd.f32 %v116, %v101
    %v150 = vadd.f32 %v121, %v102
    %v151 = vadd.f32 %v126, %v103
    %v152 = vadd.f32 %v131, %v104
    %v153 = vadd.f32 %v136, %v105
    %v154 = vadd.f32 %v141, %v106
    %v155 = vadd.f32 %v146, %v107
    %156 = vset.pattern.permute.xlu0 1
    %157 = vperm.xlu0 %156, %v43
    %v158 = vpop.permute.xlu0 %157
    %160 = vset.pattern.permute.xlu0 1
    %161 = vperm.xlu0 %160, %v44
    %v162 = vpop.permute.xlu0 %161
    %164 = vset.pattern.permute.xlu0 1
    %165 = vperm.xlu0 %164, %v45
    %v166 = vpop.permute.xlu0 %165
    %168 = vset.pattern.permute.xlu0 1
    %169 = vperm.xlu0 %168, %v46
    %v170 = vpop.permute.xlu0 %169
    %172 = vset.pattern.permute.xlu0 1
    %173 = vperm.xlu0 %172, %v47
    %v174 = vpop.permute.xlu0 %173
    %176 = vset.pattern.permute.xlu0 1
    %177 = vperm.xlu0 %176, %v48
    %v178 = vpop.permute.xlu0 %177
    %180 = vset.pattern.permute.xlu0 1
    %181 = vperm.xlu0 %180, %v49
    %v182 = vpop.permute.xlu0 %181
    %184 = vset.pattern.permute.xlu0 1
    %185 = vperm.xlu0 %184, %v50
    %v186 = vpop.permute.xlu0 %185
    %v188 = vperm.slane %v42, 1
    %v189 = vmul.f32 %v158, %v188
    %v190 = vmul.f32 %v162, %v188
    %v191 = vmul.f32 %v166, %v188
    %v192 = vmul.f32 %v170, %v188
    %v193 = vmul.f32 %v174, %v188
    %v194 = vmul.f32 %v178, %v188
    %v195 = vmul.f32 %v182, %v188
    %v196 = vmul.f32 %v186, %v188
    %v197 = vadd.f32 %v148, %v189
    %v198 = vadd.f32 %v149, %v190
    %v199 = vadd.f32 %v150, %v191
    %v200 = vadd.f32 %v151, %v192
    %v201 = vadd.f32 %v152, %v193
    %v202 = vadd.f32 %v153, %v194
    %v203 = vadd.f32 %v154, %v195
    %v204 = vadd.f32 %v155, %v196
    %205 = vset.pattern.permute.xlu0 2
    %206 = vperm.xlu0 %205, %v43
    %v207 = vpop.permute.xlu0 %206
    %209 = vset.pattern.permute.xlu0 2
    %210 = vperm.xlu0 %209, %v44
    %v211 = vpop.permute.xlu0 %210
    %213 = vset.pattern.permute.xlu0 2
    %214 = vperm.xlu0 %213, %v45
    %v215 = vpop.permute.xlu0 %214
    %217 = vset.pattern.permute.xlu0 2
    %218 = vperm.xlu0 %217, %v46
    %v219 = vpop.permute.xlu0 %218
    %221 = vset.pattern.permute.xlu0 2
    %222 = vperm.xlu0 %221, %v47
    %v223 = vpop.permute.xlu0 %222
    %225 = vset.pattern.permute.xlu0 2
    %226 = vperm.xlu0 %225, %v48
    %v227 = vpop.permute.xlu0 %226
    %229 = vset.pattern.permute.xlu0 2
    %230 = vperm.xlu0 %229, %v49
    %v231 = vpop.permute.xlu0 %230
    %233 = vset.pattern.permute.xlu0 2
    %234 = vperm.xlu0 %233, %v50
    %v235 = vpop.permute.xlu0 %234
    %v237 = vperm.slane %v42, 2
    %v238 = vmul.f32 %v207, %v237
    %v239 = vmul.f32 %v211, %v237
    %v240 = vmul.f32 %v215, %v237
    %v241 = vmul.f32 %v219, %v237
    %v242 = vmul.f32 %v223, %v237
    %v243 = vmul.f32 %v227, %v237
    %v244 = vmul.f32 %v231, %v237
    %v245 = vmul.f32 %v235, %v237
    %v246 = vadd.f32 %v197, %v238
    %v247 = vadd.f32 %v198, %v239
    %v248 = vadd.f32 %v199, %v240
    %v249 = vadd.f32 %v200, %v241
    %v250 = vadd.f32 %v201, %v242
    %v251 = vadd.f32 %v202, %v243
    %v252 = vadd.f32 %v203, %v244
    %v253 = vadd.f32 %v204, %v245
    %254 = vset.pattern.permute.xlu0 3
    %255 = vperm.xlu0 %254, %v43
    %v256 = vpop.permute.xlu0 %255
    %258 = vset.pattern.permute.xlu0 3
    %259 = vperm.xlu0 %258, %v44
    %v260 = vpop.permute.xlu0 %259
    %262 = vset.pattern.permute.xlu0 3
    %263 = vperm.xlu0 %262, %v45
    %v264 = vpop.permute.xlu0 %263
    %266 = vset.pattern.permute.xlu0 3
    %267 = vperm.xlu0 %266, %v46
    %v268 = vpop.permute.xlu0 %267
    %270 = vset.pattern.permute.xlu0 3
    %271 = vperm.xlu0 %270, %v47
    %v272 = vpop.permute.xlu0 %271
    %274 = vset.pattern.permute.xlu0 3
    %275 = vperm.xlu0 %274, %v48
    %v276 = vpop.permute.xlu0 %275
    %278 = vset.pattern.permute.xlu0 3
    %279 = vperm.xlu0 %278, %v49
    %v280 = vpop.permute.xlu0 %279
    %282 = vset.pattern.permute.xlu0 3
    %283 = vperm.xlu0 %282, %v50
    %v284 = vpop.permute.xlu0 %283
    %v286 = vperm.slane %v42, 3
    %v287 = vmul.f32 %v256, %v286
    %v288 = vmul.f32 %v260, %v286
    %v289 = vmul.f32 %v264, %v286
    %v290 = vmul.f32 %v268, %v286
    %v291 = vmul.f32 %v272, %v286
    %v292 = vmul.f32 %v276, %v286
    %v293 = vmul.f32 %v280, %v286
    %v294 = vmul.f32 %v284, %v286
    %v295 = vadd.f32 %v246, %v287
    %v296 = vadd.f32 %v247, %v288
    %v297 = vadd.f32 %v248, %v289
    %v298 = vadd.f32 %v249, %v290
    %v299 = vadd.f32 %v250, %v291
    %v300 = vadd.f32 %v251, %v292
    %v301 = vadd.f32 %v252, %v293
    %v302 = vadd.f32 %v253, %v294
    %v303 = vmax.f32 %v295, 0.0
    %v304 = vmax.f32 %v296, 0.0
    %v305 = vmax.f32 %v297, 0.0
    %v306 = vmax.f32 %v298, 0.0
    %v307 = vmax.f32 %v299, 0.0
    %v308 = vmax.f32 %v300, 0.0
    %v309 = vmax.f32 %v301, 0.0
    %v310 = vmax.f32 %v302, 0.0
    %v311 = vld [vmem:[#allocation5 + $0x40] sm:$0xff]
    %v312 = vld [vmem:[#allocation5 + $0x48] sm:$0xff]
    %v313 = vld [vmem:[#allocation5 + $0x50] sm:$0xff]
    %v314 = vld [vmem:[#allocation5 + $0x58] sm:$0xff]
    %v315 = vld [vmem:[#allocation5 + $0x60] sm:$0xff]
    %v316 = vld [vmem:[#allocation5 + $0x68] sm:$0xff]
    %v317 = vld [vmem:[#allocation5 + $0x70] sm:$0xff]
    %v318 = vld [vmem:[#allocation5 + $0x78] sm:$0xff]
    %v319 = vld [vmem:[#allocation5 + $0xc8] sm:$0xff]
    %v320 = vld [vmem:[#allocation5 + $0xd0] sm:$0xff]
    %v321 = vld [vmem:[#allocation5 + $0xd8] sm:$0xff]
    %v322 = vld [vmem:[#allocation5 + $0xe0] sm:$0xff]
    %v323 = vld [vmem:[#allocation5 + $0xe8] sm:$0xff]
    %v324 = vld [vmem:[#allocation5 + $0xf0] sm:$0xff]
    %v325 = vld [vmem:[#allocation5 + $0xf8] sm:$0xff]
    %v326 = vld [vmem:[#allocation5 + $0x100] sm:$0xff]
    %328 = vset.pattern.permute.xlu0 0
    %329 = vperm.xlu0 %328, %v319
    %v330 = vpop.permute.xlu0 %329
    %333 = vset.pattern.permute.xlu0 0
    %334 = vperm.xlu0 %333, %v320
    %v335 = vpop.permute.xlu0 %334
    %338 = vset.pattern.permute.xlu0 0
    %339 = vperm.xlu0 %338, %v321
    %v340 = vpop.permute.xlu0 %339
    %343 = vset.pattern.permute.xlu0 0
    %344 = vperm.xlu0 %343, %v322
    %v345 = vpop.permute.xlu0 %344
    %348 = vset.pattern.permute.xlu0 0
    %349 = vperm.xlu0 %348, %v323
    %v350 = vpop.permute.xlu0 %349
    %353 = vset.pattern.permute.xlu0 0
    %354 = vperm.xlu0 %353, %v324
    %v355 = vpop.permute.xlu0 %354
    %358 = vset.pattern.permute.xlu0 0
    %359 = vperm.xlu0 %358, %v325
    %v360 = vpop.permute.xlu0 %359
    %363 = vset.pattern.permute.xlu0 0
    %364 = vperm.xlu0 %363, %v326
    %v365 = vpop.permute.xlu0 %364
    %vm367 = vcmask 523264
    %v369 = vsel %vm367, %v311, 0
    %v372 = vsel %vm367, %v312, 0
    %v375 = vsel %vm367, %v313, 0
    %v378 = vsel %vm367, %v314, 0
    %v381 = vsel %vm367, %v315, 0
    %v384 = vsel %vm367, %v316, 0
    %v387 = vsel %vm367, %v317, 0
    %v390 = vsel %vm367, %v318, 0
    %392 = vmatpush.msra.mxu0 0.0
    %393 = vmatpush.msra.mxu0 0.0
    %394 = vmatpush.msra.mxu0 0.0
    %395 = vmatpush.msra.mxu0 0.0
    %396 = vmatpush.msra.mxu0 0.0
    %397 = vmatpush.msra.mxu0 0.0
    %398 = vmatpush.msra.mxu0 0.0
    %399 = vmatpush.msra.mxu0 0.0
    %400 = vmatpush.msra.mxu0 %v310
    %401 = vmatpush.msra.mxu0 %v309
    %402 = vmatpush.msra.mxu0 %v308
    %403 = vmatpush.msra.mxu0 %v307
    %404 = vmatpush.msra.mxu0 %v306
    %405 = vmatpush.msra.mxu0 %v305
    %406 = vmatpush.msra.mxu0 %v304
    %407 = vmatpush.msra.mxu0 %v303
    %408 = vmatmul.f32.gmra.mxu0 %v369
    %v409 = vpop.f32.mrf.mxu0
    %v410 = vadd.f32 %v330, %v409
    %411 = vmatmul.f32.gmra.mxu0 %v372
    %v412 = vpop.f32.mrf.mxu0
    %v413 = vadd.f32 %v335, %v412
    %414 = vmatmul.f32.gmra.mxu0 %v375
    %v415 = vpop.f32.mrf.mxu0
    %v416 = vadd.f32 %v340, %v415
    %417 = vmatmul.f32.gmra.mxu0 %v378
    %v418 = vpop.f32.mrf.mxu0
    %v419 = vadd.f32 %v345, %v418
    %420 = vmatmul.f32.gmra.mxu0 %v381
    %v421 = vpop.f32.mrf.mxu0
    %v422 = vadd.f32 %v350, %v421
    %423 = vmatmul.f32.gmra.mxu0 %v384
    %v424 = vpop.f32.mrf.mxu0
    %v425 = vadd.f32 %v355, %v424
    %426 = vmatmul.f32.gmra.mxu0 %v387
    %v427 = vpop.f32.mrf.mxu0
    %v428 = vadd.f32 %v360, %v427
    %429 = vmatmul.f32.gmra.mxu0 %v390
    %v430 = vpop.f32.mrf.mxu0
    %v431 = vadd.f32 %v365, %v430
    %432 = vdwg.mxu0
    %v433 = vmax.f32 %v410, 0.0
    %v434 = vmax.f32 %v413, 0.0
    %v435 = vmax.f32 %v416, 0.0
    %v436 = vmax.f32 %v419, 0.0
    %v437 = vmax.f32 %v422, 0.0
    %v438 = vmax.f32 %v425, 0.0
    %v439 = vmax.f32 %v428, 0.0
    %v440 = vmax.f32 %v431, 0.0
    %v441 = vld [vmem:[#allocation5 + $0x80] sm:$0xff]
    %v442 = vld [vmem:[#allocation5 + $0x108] sm:$0xff]
    %444 = vset.pattern.permute.xlu0 0
    %445 = vperm.xlu0 %444, %v442
    %v446 = vpop.permute.xlu0 %445
    %v449 = vsel %vm367, %v441, 0
    %451 = vmatpush.msra.mxu0 0.0
    %452 = vmatpush.msra.mxu0 0.0
    %453 = vmatpush.msra.mxu0 0.0
    %454 = vmatpush.msra.mxu0 0.0
    %455 = vmatpush.msra.mxu0 0.0
    %456 = vmatpush.msra.mxu0 0.0
    %457 = vmatpush.msra.mxu0 0.0
    %458 = vmatpush.msra.mxu0 0.0
    %459 = vmatpush.msra.mxu0 %v440
    %460 = vmatpush.msra.mxu0 %v439
    %461 = vmatpush.msra.mxu0 %v438
    %462 = vmatpush.msra.mxu0 %v437
    %463 = vmatpush.msra.mxu0 %v436
    %464 = vmatpush.msra.mxu0 %v435
    %465 = vmatpush.msra.mxu0 %v434
    %466 = vmatpush.msra.mxu0 %v433
    %467 = vmatmul.f32.gmra.mxu0 %v449
    %v468 = vpop.f32.mrf.mxu0
    %v469 = vadd.f32 %v446, %v468
    %470 = vdwg.mxu0
    %471 = vst [vmem:[#allocation7] sm:$0x3] %v469
    // Predicated region
    $region18: #{tpu_custom_call.1} parent=1 // pred_check
      _
    $region19: #{tpu_custom_call.1} parent=1 // pred_check_branch
      %473 = sbr.rel (0) target = $region21
    $region20: #{tpu_custom_call.1} parent=1 // pred_region
      %475 = vsyncadd [#allocation4], 0
      %s477 = sshll.u32 [#allocation7], 4
      %s478 = int_to_ptr.vmem [resolvable:$true] %s477
      %s479 = sshll.u32 %s2, 4
      %s480 = int_to_ptr.hbm [resolvable:$true] %s479
      %482 = dma.vmem_to_hbm [thread:$0]  %s478, 32, %s480, [#allocation4]
    $region21: #{tpu_custom_call.1} parent=1 // pred_fallthru
      _
    // Predicated region
    $region22: #{tpu_custom_call.1} parent=1 // pred_check
      _
    $region23: #{tpu_custom_call.1} parent=1 // pred_check_branch
      %484 = sbr.rel (0) target = $region25
    $region24: #{tpu_custom_call.1} parent=1 // pred_region
      %486 = dma.done [#allocation4], 32
    $region25: #{tpu_custom_call.1} parent=1 // pred_fallthru
      _
    %487 = vsyncpa [#allocation3], 1
    %488 = vsyncpa [#allocation6], 1
    %489 = vsyncpa [#allocation4], 1

</llo_original>
